<compile_context>
chip_gen: v5e
topology: v5e:2x2
jax: 0.10.0
libtpu: 0.0.40
codegen_flags: <defaults>
</compile_context>

<pallas_src>
import math

import jax
import jax.numpy as jnp
from jax.experimental import pallas as pl
from jax.experimental.pallas import tpu as pltpu


NEG_SLOPE = 0.01  # nn.LeakyReLU() default


def _leaky_relu(x):
    # max(x, a*x) == where(x > 0, x, a*x) for 0 < a < 1; one fewer VALU op/elem.
    return jnp.maximum(x, NEG_SLOPE * x)


def _round_up(x, m):
    return (x + m - 1) // m * m


def point_head_kernel(cells_ref, fproj_ref,
                      w0c_ref, w1_ref, b1_ref, w2_ref, b2_ref,
                      out_ref):
    # cells_ref : (1, 1, tm)   tm inner-cell scalars for this (batch, tile)
    # fproj_ref : (1, 256, 1)  per-batch  W0[:,1:] @ fts + b0  (hoisted to wrapper)
    # Weights are in "out-features-major" orientation so the point axis stays on
    # lanes throughout and the output store is a full lane-dense (1, tm) block.
    cdt = w0c_ref.dtype                          # h0-stage compute dtype (f32 / bf16)
    c = cells_ref[0].astype(cdt)                 # (1, tm)
    fproj = fproj_ref[0]                         # (256, 1), already in cdt

    # fc0: col j of H0 = c_j * W0[:, 0] + (W0[:, 1:] @ fts + b0).  The concat of
    # the original module becomes a rank-1 VPU broadcast multiply-add -- no MXU,
    # no lane-padded (tm, d+1) concat tile, no per-tile fts projection.
    h0 = _leaky_relu(w0c_ref[...] * c + fproj)                              # (256, tm)

    # nn.Dropout(0.1): identity in eval mode, not applied.

    # fc1: the single MXU matmul.  Operands may be bf16; accumulation is f32.
    # NOTE: the pure-f32 path uses Mosaic's default f32 MXU scheme (not forced
    # to Precision.HIGHEST); covered by the 1e-4 test tolerance below.
    h1 = jnp.dot(w1_ref[...], h0.astype(w1_ref.dtype),
                 preferred_element_type=jnp.float32) + b1_ref[...]          # (128, tm)
    h1 = _leaky_relu(h1)

    # top (128 -> 1): VPU multiply + sublane reduce keeps the (1, tm) result
    # lane-dense (an N=1 MXU matmul bought nothing verifiable here).
    y = jnp.sum(w2_ref[...] * h1, axis=0, keepdims=True) + b2_ref[...]      # (1, tm)
    out_ref[0] = y.astype(out_ref.dtype)


def point_head_forward(cells, fts, params, *, tm=4096,
                       matmul_dtype=None, h0_dtype=None,
                       vmem_limit_bytes=None):
    """cells: (B, S, 1) f32, fts: (B, d) f32 -> (B, S-2) f32.

    matmul_dtype : dtype of the fc1 MXU operands.  bf16 is MXU-native on every
                   generation (v5e included); None keeps f32.
    h0_dtype     : dtype of the 256 x tm h0 VPU stage.  bf16 is worthwhile on
                   v6e/v7x (bf16 VALUs); keep None (f32) on v5e.
    vmem_limit_bytes : raise the scoped-VMEM limit; only needed for tm >= 8192
                   on v5e (16 MiB default scoped VMEM).
    """
    B, S, _ = cells.shape
    d = fts.shape[-1]
    Sm = S - 2

    # Row tile: multiple of 128 (lane-dense output blocks), large by default to
    # amortize per-grid-step overhead; only shrinks when Sm is small.  Rows are
    # zero-padded up to a multiple of tm (elementwise-safe) and sliced off after.
    tm = max(128, min(_round_up(tm, 128), _round_up(Sm, 128)))
    Sm_pad = _round_up(Sm, tm)
    # v7x megacore note: grid = (B, Sm_pad // tm) with both axes "parallel";
    # B >= 2 keeps both TensorCores busy even when Sm fits a single tile.

    # Glue: inner cells as a (B, 1, Sm_pad) lane-major slab.
    cells_mid = cells[:, 1:S - 1, 0]                                   # (B, Sm)
    cells_mid = jnp.pad(cells_mid, ((0, 0), (0, Sm_pad - Sm)))[:, None, :]

    w0, b0, w1, b1, w2, b2 = (params[k] for k in ("w0", "b0", "w1", "b1", "w2", "b2"))

    h0_dt = jnp.float32 if h0_dtype is None else h0_dtype
    mm_dt = w1.dtype if matmul_dtype is None else matmul_dtype

    # Hoisted per-batch fts projection (tiny XLA matmul, once per call instead
    # of once per row tile inside the kernel).
    fproj = jnp.dot(fts, w0[:, 1:].T, precision=jax.lax.Precision.HIGHEST) + b0
    fproj = fproj.astype(h0_dt)[:, :, None]                            # (B, 256, 1)

    # Weights in kernel ("out-major") orientation.
    w0c = w0[:, 0:1].astype(h0_dt)          # (256, 1)  column multiplying the cell scalar
    w1k = w1.astype(mm_dt)                  # (128, 256)
    b1c = b1.reshape(128, 1)
    w2c = w2.reshape(128, 1)                # (1, 128) -> (128, 1)
    b2c = b2.reshape(1, 1)

    grid = (B, Sm_pad // tm)
    full = lambda b, t: (0, 0)              # whole-array blocks for weights / biases

    # Advisory cost estimate so XLA can schedule/overlap around the custom call.
    h0_isz = jnp.dtype(h0_dt).itemsize
    mm_isz = jnp.dtype(mm_dt).itemsize
    flops = B * Sm * (2 * 256 + 2 * 256 * 128 + 2 * 128)
    bytes_acc = (B * Sm_pad * 4                       # cells in
                 + B * 256 * h0_isz                   # fproj
                 + 256 * h0_isz                       # w0c
                 + 128 * 256 * mm_isz                 # w1
                 + 128 * 4 + 128 * 4 + 4              # b1, w2, b2
                 + B * Sm_pad * 4)                    # out

    out = pl.pallas_call(
        point_head_kernel,
        out_shape=jax.ShapeDtypeStruct((B, 1, Sm_pad), jnp.float32),
        grid_spec=pltpu.PrefetchScalarGridSpec(
            num_scalar_prefetch=0,
            grid=grid,
            in_specs=[
                pl.BlockSpec((1, 1, tm), lambda b, t: (b, 0, t)),    # cells rows
                pl.BlockSpec((1, 256, 1), lambda b, t: (b, 0, 0)),   # fproj (per batch)
                pl.BlockSpec((256, 1), full),                        # W0[:, :1]
                pl.BlockSpec((128, 256), full),                      # W1
                pl.BlockSpec((128, 1), full),                        # b1
                pl.BlockSpec((128, 1), full),                        # W2^T
                pl.BlockSpec((1, 1), full),                          # b2
            ],
            out_specs=pl.BlockSpec((1, 1, tm), lambda b, t: (b, 0, t)),
        ),
        compiler_params=pltpu.CompilerParams(
            dimension_semantics=("parallel", "parallel"),
            vmem_limit_bytes=vmem_limit_bytes),
        cost_estimate=pl.CostEstimate(flops=int(flops), transcendentals=0,
                                      bytes_accessed=int(bytes_acc)),
    )(cells_mid, fproj, w0c, w1k, b1c, w2c, b2c)

    return out[:, 0, :Sm]


def xavier_uniform(key, shape, dtype=jnp.float32):
    fan_out, fan_in = shape            # PyTorch Linear weight layout: (out, in)
    bound = math.sqrt(6.0 / (fan_in + fan_out))
    return jax.random.uniform(key, shape, dtype, -bound, bound)


def init_params(key, d):
    k0, k1, k2 = jax.random.split(key, 3)
    return dict(
        w0=xavier_uniform(k0, (256, d + 1)), b0=jnp.full((256,), 0.01, jnp.float32),
        w1=xavier_uniform(k1, (128, 256)),   b1=jnp.full((128,), 0.01, jnp.float32),
        w2=xavier_uniform(k2, (1, 128)),     b2=jnp.full((1,), 0.01, jnp.float32),
    )


def reference_forward(cells, fts, params):
    """Pure-JAX reference mirroring the PyTorch forward (eval mode)."""
    w0, b0, w1, b1, w2, b2 = (params[k] for k in ("w0", "b0", "w1", "b1", "w2", "b2"))
    B, S, _ = cells.shape
    d = fts.shape[-1]
    hi = jax.lax.Precision.HIGHEST
    x = jnp.concatenate(
        [cells[:, 1:-1, :], jnp.broadcast_to(fts[:, None, :], (B, S - 2, d))], axis=2)
    x = jnp.where(jnp.dot(x, w0.T, precision=hi) + b0 > 0,
                  jnp.dot(x, w0.T, precision=hi) + b0,
                  NEG_SLOPE * (jnp.dot(x, w0.T, precision=hi) + b0))
    x = jnp.dot(x, w1.T, precision=hi) + b1
    x = jnp.where(x > 0, x, NEG_SLOPE * x)
    return (jnp.dot(x, w2.T, precision=hi) + b2)[..., 0]


if __name__ == "__main__":
    key = jax.random.PRNGKey(0)
    d = 7          # fc0 input = d + 1 = 8
    B, S = 2, 10   # inner cells = S - 2 = 8

    kp, kc, kf = jax.random.split(key, 3)
    params = init_params(kp, d)
    cells = jax.random.normal(kc, (B, S, 1), jnp.float32)
    fts = jax.random.normal(kf, (B, d), jnp.float32)

    ref = reference_forward(cells, fts, params)

    # f32 path (all chips)
    out = jax.block_until_ready(point_head_forward(cells, fts, params))
    assert out.shape == (B, S - 2), out.shape
    assert jnp.allclose(out, ref, atol=1e-4, rtol=1e-4), \
        f"f32 max err {jnp.max(jnp.abs(out - ref))}"

    # bf16 MXU operands only (all chips incl. v5e), f32 VPU h0 stage
    out_mm = jax.block_until_ready(
        point_head_forward(cells, fts, params, matmul_dtype=jnp.bfloat16))
    assert jnp.allclose(out_mm, ref, atol=5e-2, rtol=5e-2), \
        f"bf16-mxu max err {jnp.max(jnp.abs(out_mm - ref))}"

    # bf16 MXU + bf16 h0 VPU stage (the v6e / v7x fast path)
    out_bf = jax.block_until_ready(
        point_head_forward(cells, fts, params,
                           matmul_dtype=jnp.bfloat16, h0_dtype=jnp.bfloat16))
    assert jnp.allclose(out_bf, ref, atol=5e-2, rtol=5e-2), \
        f"bf16-vpu max err {jnp.max(jnp.abs(out_bf - ref))}"

    # Multi-tile path: force tm=128 with more rows to exercise the row-tile grid.
    B2, S2 = 2, 400
    kc2, kf2 = jax.random.split(jax.random.PRNGKey(1))
    cells2 = jax.random.normal(kc2, (B2, S2, 1), jnp.float32)
    fts2 = jax.random.normal(kf2, (B2, d), jnp.float32)
    ref2 = reference_forward(cells2, fts2, params)
    out2 = jax.block_until_ready(point_head_forward(cells2, fts2, params, tm=128))
    assert out2.shape == (B2, S2 - 2), out2.shape
    assert jnp.allclose(out2, ref2, atol=1e-4, rtol=1e-4), \
        f"multi-tile max err {jnp.max(jnp.abs(out2 - ref2))}"

    print("KERNEL_OK")
</pallas_src>

<mosaic_0001>
module attributes {stable_mosaic.version = 11 : i64} {
  func.func @point_head_kernel(%arg0: i32, %arg1: i32, %arg2: memref<1x1x128xf32, #tpu.memory_space<vmem>>, %arg3: memref<1x256x1xf32, #tpu.memory_space<vmem>>, %arg4: memref<256x1xf32, #tpu.memory_space<vmem>>, %arg5: memref<128x256xf32, #tpu.memory_space<vmem>>, %arg6: memref<128x1xf32, #tpu.memory_space<vmem>>, %arg7: memref<128x1xf32, #tpu.memory_space<vmem>>, %arg8: memref<1x1xf32, #tpu.memory_space<vmem>>, %arg9: memref<1x1x128xf32, #tpu.memory_space<vmem>>) attributes {dimension_semantics = [#tpu.dimension_semantics<parallel>, #tpu.dimension_semantics<parallel>], iteration_bounds = array<i64: 2, 1>, scalar_prefetch = 0 : i64, scratch_operands = 0 : i64, tpu.core_type = #tpu.core_type<tc>, window_params = [{transform_indices = @transform_0, window_bounds = array<i64: 1, 1, 128>}, {transform_indices = @transform_1, window_bounds = array<i64: 1, 256, 1>}, {pipeline_mode = #tpu.pipeline_mode<synchronous>, transform_indices = @transform_2, window_bounds = array<i64: 256, 1>}, {pipeline_mode = #tpu.pipeline_mode<synchronous>, transform_indices = @transform_3, window_bounds = array<i64: 128, 256>}, {pipeline_mode = #tpu.pipeline_mode<synchronous>, transform_indices = @transform_4, window_bounds = array<i64: 128, 1>}, {pipeline_mode = #tpu.pipeline_mode<synchronous>, transform_indices = @transform_5, window_bounds = array<i64: 128, 1>}, {pipeline_mode = #tpu.pipeline_mode<synchronous>, transform_indices = @transform_6, window_bounds = array<i64: 1, 1>}, {transform_indices = @transform_7, window_bounds = array<i64: 1, 1, 128>}]} {
    %c0 = arith.constant 0 : index
    %c0_0 = arith.constant 0 : index
    %c0_1 = arith.constant 0 : index
    %0 = vector.load %arg2[%c0, %c0_0, %c0_1] : memref<1x1x128xf32, #tpu.memory_space<vmem>>, vector<1x1x128xf32>
    %1 = vector.shape_cast %0 : vector<1x1x128xf32> to vector<1x128xf32>
    %c0_2 = arith.constant 0 : index
    %c0_3 = arith.constant 0 : index
    %c0_4 = arith.constant 0 : index
    %2 = vector.load %arg3[%c0_2, %c0_3, %c0_4] : memref<1x256x1xf32, #tpu.memory_space<vmem>>, vector<1x256x1xf32>
    %3 = vector.shape_cast %2 : vector<1x256x1xf32> to vector<256x1xf32>
    %c0_5 = arith.constant 0 : index
    %c0_6 = arith.constant 0 : index
    %4 = vector.load %arg4[%c0_5, %c0_6] : memref<256x1xf32, #tpu.memory_space<vmem>>, vector<256x1xf32>
    %5 = vector.broadcast %4 : vector<256x1xf32> to vector<256x128xf32>
    %6 = vector.broadcast %1 : vector<1x128xf32> to vector<256x128xf32>
    %7 = arith.mulf %5, %6 : vector<256x128xf32>
    %8 = vector.broadcast %3 : vector<256x1xf32> to vector<256x128xf32>
    %9 = arith.addf %7, %8 : vector<256x128xf32>
    %cst = arith.constant 0.00999999977 : f32
    %10 = vector.broadcast %cst : f32 to vector<256x128xf32>
    %11 = arith.mulf %10, %9 : vector<256x128xf32>
    %12 = arith.maximumf %9, %11 : vector<256x128xf32>
    %c0_7 = arith.constant 0 : index
    %c0_8 = arith.constant 0 : index
    %13 = vector.load %arg5[%c0_7, %c0_8] : memref<128x256xf32, #tpu.memory_space<vmem>>, vector<128x256xf32>
    %cst_9 = arith.constant dense<0.000000e+00> : vector<128x128xf32>
    %14 = tpu.matmul %13, %12, %cst_9 {dimension_numbers = #tpu.dot_dimension_numbers<[1], [0], [0], [1], [0, 0, 1, 1], [], []>} : vector<128x256xf32>, vector<256x128xf32>, vector<128x128xf32> -> vector<128x128xf32>
    %c0_10 = arith.constant 0 : index
    %c0_11 = arith.constant 0 : index
    %15 = vector.load %arg6[%c0_10, %c0_11] : memref<128x1xf32, #tpu.memory_space<vmem>>, vector<128x1xf32>
    %16 = vector.broadcast %15 : vector<128x1xf32> to vector<128x128xf32>
    %17 = arith.addf %14, %16 : vector<128x128xf32>
    %cst_12 = arith.constant 0.00999999977 : f32
    %18 = vector.broadcast %cst_12 : f32 to vector<128x128xf32>
    %19 = arith.mulf %18, %17 : vector<128x128xf32>
    %20 = arith.maximumf %17, %19 : vector<128x128xf32>
    %c0_13 = arith.constant 0 : index
    %c0_14 = arith.constant 0 : index
    %21 = vector.load %arg7[%c0_13, %c0_14] : memref<128x1xf32, #tpu.memory_space<vmem>>, vector<128x1xf32>
    %22 = vector.broadcast %21 : vector<128x1xf32> to vector<128x128xf32>
    %23 = arith.mulf %22, %20 : vector<128x128xf32>
    %cst_15 = arith.constant dense<0.000000e+00> : vector<128xf32>
    %24 = vector.multi_reduction <add>, %23, %cst_15 [0] : vector<128x128xf32> to vector<128xf32>
    %25 = vector.shape_cast %24 : vector<128xf32> to vector<1x128xf32>
    %c0_16 = arith.constant 0 : index
    %c0_17 = arith.constant 0 : index
    %26 = vector.load %arg8[%c0_16, %c0_17] : memref<1x1xf32, #tpu.memory_space<vmem>>, vector<1x1xf32>
    %27 = vector.broadcast %26 : vector<1x1xf32> to vector<1x128xf32>
    %28 = arith.addf %25, %27 : vector<1x128xf32>
    %c0_18 = arith.constant 0 : index
    %c0_19 = arith.constant 0 : index
    %c0_20 = arith.constant 0 : index
    %29 = vector.load %arg9[%c0_18, %c0_19, %c0_20] : memref<1x1x128xf32, #tpu.memory_space<vmem>>, vector<1x1x128xf32>
    %30 = vector.shape_cast %29 : vector<1x1x128xf32> to vector<1x128xf32>
    %31 = vector.shape_cast %28 : vector<1x128xf32> to vector<1x1x128xf32>
    tpu.vector_store %arg9[%c0_18, %c0_19, %c0_20], %31 {strides = array<i32>} : memref<1x1x128xf32, #tpu.memory_space<vmem>>, vector<1x1x128xf32>,
    return
  }
  func.func @transform_0(%arg0: i32, %arg1: i32) -> (i32, i32, i32) {
    %c0_i32 = arith.constant 0 : i32
    %c0_i32_0 = arith.constant 0 : i32
    return %arg0, %c0_i32, %arg1 : i32, i32, i32
  }
  func.func @transform_1(%arg0: i32, %arg1: i32) -> (i32, i32, i32) {
    %c0_i32 = arith.constant 0 : i32
    %c0_i32_0 = arith.constant 0 : i32
    %c0_i32_1 = arith.constant 0 : i32
    return %arg0, %c0_i32, %c0_i32_0 : i32, i32, i32
  }
  func.func @transform_2(%arg0: i32, %arg1: i32) -> (i32, i32) {
    %c0_i32 = arith.constant 0 : i32
    %c0_i32_0 = arith.constant 0 : i32
    %c0_i32_1 = arith.constant 0 : i32
    return %c0_i32, %c0_i32_0 : i32, i32
  }
  func.func @transform_3(%arg0: i32, %arg1: i32) -> (i32, i32) {
    %c0_i32 = arith.constant 0 : i32
    %c0_i32_0 = arith.constant 0 : i32
    %c0_i32_1 = arith.constant 0 : i32
    return %c0_i32, %c0_i32_0 : i32, i32
  }
  func.func @transform_4(%arg0: i32, %arg1: i32) -> (i32, i32) {
    %c0_i32 = arith.constant 0 : i32
    %c0_i32_0 = arith.constant 0 : i32
    %c0_i32_1 = arith.constant 0 : i32
    return %c0_i32, %c0_i32_0 : i32, i32
  }
  func.func @transform_5(%arg0: i32, %arg1: i32) -> (i32, i32) {
    %c0_i32 = arith.constant 0 : i32
    %c0_i32_0 = arith.constant 0 : i32
    %c0_i32_1 = arith.constant 0 : i32
    return %c0_i32, %c0_i32_0 : i32, i32
  }
  func.func @transform_6(%arg0: i32, %arg1: i32) -> (i32, i32) {
    %c0_i32 = arith.constant 0 : i32
    %c0_i32_0 = arith.constant 0 : i32
    %c0_i32_1 = arith.constant 0 : i32
    return %c0_i32, %c0_i32_0 : i32, i32
  }
  func.func @transform_7(%arg0: i32, %arg1: i32) -> (i32, i32, i32) {
    %c0_i32 = arith.constant 0 : i32
    %c0_i32_0 = arith.constant 0 : i32
    return %arg0, %c0_i32, %arg1 : i32, i32, i32
  }
}

</mosaic_0001>

<llo_original>
// kernel: tpu_custom_call.1
$region0: #{tpu_custom_call.1}
  #allocation0 [shape = 'u32[]', space=smem, size = 0x4, offset = 0x4, fixed_abs, tag = 'smem constant byte address 0x4 - core index']
  #allocation1 [shape = 'u32[72,128]{1,0:T(1,128)}', space=vmem, size = 0x9000, scoped, tag = 'internal scratch']
  #allocation2 [shape = 'f32[1,1]{1,0:T(1,128)S(1)}', space=vmem, size = 0x200, scoped, tag = 'scoped memory for tpu_custom_call.1']
  %s0 = inlined_call_operand.vmem [shape: f32[2,1,128], index: 0, kind: input, shape index: {}]
  %s1 = inlined_call_operand.vmem [shape: f32[2,256,1], index: 1, kind: input, shape index: {}]
  %s2 = inlined_call_operand.vmem [shape: f32[256,1], index: 2, kind: input, shape index: {}]
  %s3 = inlined_call_operand.vmem [shape: f32[128,256], index: 3, kind: input, shape index: {}]
  %s4 = inlined_call_operand.vmem [shape: f32[128,1], index: 4, kind: input, shape index: {}]
  %s5 = inlined_call_operand.vmem [shape: f32[128,1], index: 5, kind: input, shape index: {}]
  %s6 = inlined_call_operand.<no memory space> [shape: f32[1,1], index: 6, kind: input, shape index: {}]
  %s7 = inlined_call_operand.hbm [shape: f32[2,1,128], index: 7, kind: output, shape index: {}]
  %s8 = sld [smem:[#allocation0]]
  $region61: #{tpu_custom_call.1} parent=0
    _
  %s10 = ssub.s32 1, %s8
  %s11 = scalar_select 0, %s10, %s8
  %v12 = vstv %s6
  %13 = vst [vmem:[#allocation2] sm:$0x1] %v12
  $region1: #{tpu_custom_call.1} parent=0
    #allocation3 [shape = 'u8[1024]{0}', space=vmem, size = 0x400, scoped, tag = 'output window, operand 0']
    #allocation4 [shape = 's32[2]{0}', space=sflag, size = 0x8, scoped, tag = 'scoped memory for tpu_custom_call.1']
    %14 = vsyncpa [#allocation4], 0
    %s15 = scalar_lea.sflag [#allocation4], 1
    %16 = vsyncpa %s15, 0
    loop: start=0, step=1, limit=4
    $region2: #{tpu_custom_call.1} parent=1 // loop_pre_header
      _
    $region3: #{tpu_custom_call.1} parent=1 // loop_header
      %s18 = sphi 0, %s22
      %p19 = scmp.ge.s32.totalorder %s18, 4
      %s25 = sphi 0, %s37
      %s26 = sphi 0, %s33
      %s27 = sphi 0, %s25
      %s28 = sphi 0, %s26
      %s29 = sphi 0, %s27
      %s30 = sphi 0, %s28
      %s42 = sphi 0, %s44
      %s45 = sphi 0, %s42
      %s46 = sphi 0, %s45
      %s62 = sphi 0, %s46
      %s68 = sphi 0, %s70
      %s71 = sphi 0, %s68
      %s72 = sphi 0, %s71
      %s88 = sphi 0, %s72
      %s92 = sphi 0, %s92
      %s94 = sphi 0, %s92
      %s95 = sphi 0, %s94
      %s109 = sphi 0, %s95
      %s113 = sphi 0, %s113
      %s115 = sphi 0, %s113
      %s116 = sphi 0, %s115
      %s130 = sphi 0, %s116
      %s134 = sphi 0, %s134
      %s136 = sphi 0, %s134
      %s137 = sphi 0, %s136
      %s151 = sphi 0, %s137
      %s155 = sphi 0, %s155
      %s157 = sphi 0, %s155
      %s158 = sphi 0, %s157
      %s172 = sphi 0, %s158
      %s176 = sphi 0, %s176
      %s178 = sphi 0, %s176
      %s179 = sphi 0, %s178
      %s193 = sphi 0, %s179
      %s201 = sphi 0, %s203
      %s204 = sphi 0, %s201
      %s205 = sphi 0, %s204
      %s221 = sphi 0, %s205
    $region4: #{tpu_custom_call.1} parent=1 // loop_header_branch
      %21 = sbr.rel (%p19) target = $region8
    $region5: #{tpu_custom_call.1} parent=1 // loop_body
      %s23 = ssub.s32 %s18, 1
      %s24 = ssub.s32 %s18, 2
      %s31 = sadd.s32 1, %s26
      %p32 = scmp.ge.s32.totalorder %s31, 1
      %s33 = scalar_select %p32, 0, %s31
      %s34 = sadd.s32 1, %s25
      %s35 = scalar_select %p32, %s34, %s25
      %p36 = scmp.ge.s32.totalorder %s35, 2
      %s37 = scalar_select %p36, 0, %s35
      %s38 = ssub.s32 %s25, %s37
      %s39 = ssub.s32 %s26, %s33
      %s40 = sor.u32 %s38, %s39
      %p41 = scmp.eq.s32.totalorder %s40, 0
      %s43 = sadd.s32 %s42, 1
      %s44 = scalar_select %p41, %s42, %s43
      %p47 = pneg %p41
      %p48 = scmp.eq.s32.totalorder %s18, 1
      %p49 = por %p47, %p48
      %p50 = scmp.ne.s32.totalorder %s42, %s45
      %p51 = scmp.eq.s32.totalorder %s18, 0
      %p52 = por %p50, %p51
      %p53 = scmp.ne.s32.totalorder %s42, %s45
      %p54 = scmp.eq.s32.totalorder %s23, 1
      %p55 = por %p53, %p54
      %p56 = scmp.ne.s32.totalorder %s45, %s46
      %p57 = scmp.eq.s32.totalorder %s23, 0
      %p58 = por %p56, %p57
      %p59 = scmp.ne.s32.totalorder %s45, %s46
      %p60 = scmp.eq.s32.totalorder %s24, 1
      %p61 = por %p59, %p60
      %p63 = scmp.ne.s32.totalorder %s46, %s62
      %p64 = scmp.eq.s32.totalorder %s24, 0
      %p65 = por %p63, %p64
      %s66 = ssub.s32 %s25, %s37
      %p67 = scmp.eq.s32.totalorder %s66, 0
      %s69 = sadd.s32 %s68, 1
      %s70 = scalar_select %p67, %s68, %s69
      %p73 = pneg %p67
      %p74 = scmp.eq.s32.totalorder %s18, 1
      %p75 = por %p73, %p74
      %p76 = scmp.ne.s32.totalorder %s68, %s71
      %p77 = scmp.eq.s32.totalorder %s18, 0
      %p78 = por %p76, %p77
      %p79 = scmp.ne.s32.totalorder %s68, %s71
      %p80 = scmp.eq.s32.totalorder %s23, 1
      %p81 = por %p79, %p80
      %p82 = scmp.ne.s32.totalorder %s71, %s72
      %p83 = scmp.eq.s32.totalorder %s23, 0
      %p84 = por %p82, %p83
      %p85 = scmp.ne.s32.totalorder %s71, %s72
      %p86 = scmp.eq.s32.totalorder %s24, 1
      %p87 = por %p85, %p86
      %p89 = scmp.ne.s32.totalorder %s72, %s88
      %p90 = scmp.eq.s32.totalorder %s24, 0
      %p91 = por %p89, %p90
      %s93 = sadd.s32 %s92, 1
      %p96 = scmp.eq.s32.totalorder %s18, 1
      %p97 = scmp.ne.s32.totalorder %s92, %s94
      %p98 = scmp.eq.s32.totalorder %s18, 0
      %p99 = por %p97, %p98
      %p100 = scmp.ne.s32.totalorder %s92, %s94
      %p101 = scmp.eq.s32.totalorder %s23, 1
      %p102 = por %p100, %p101
      %p103 = scmp.ne.s32.totalorder %s94, %s95
      %p104 = scmp.eq.s32.totalorder %s23, 0
      %p105 = por %p103, %p104
      %p106 = scmp.ne.s32.totalorder %s94, %s95
      %p107 = scmp.eq.s32.totalorder %s24, 1
      %p108 = por %p106, %p107
      %p110 = scmp.ne.s32.totalorder %s95, %s109
      %p111 = scmp.eq.s32.totalorder %s24, 0
      %p112 = por %p110, %p111
      %s114 = sadd.s32 %s113, 1
      %p117 = scmp.eq.s32.totalorder %s18, 1
      %p118 = scmp.ne.s32.totalorder %s113, %s115
      %p119 = scmp.eq.s32.totalorder %s18, 0
      %p120 = por %p118, %p119
      %p121 = scmp.ne.s32.totalorder %s113, %s115
      %p122 = scmp.eq.s32.totalorder %s23, 1
      %p123 = por %p121, %p122
      %p124 = scmp.ne.s32.totalorder %s115, %s116
      %p125 = scmp.eq.s32.totalorder %s23, 0
      %p126 = por %p124, %p125
      %p127 = scmp.ne.s32.totalorder %s115, %s116
      %p128 = scmp.eq.s32.totalorder %s24, 1
      %p129 = por %p127, %p128
      %p131 = scmp.ne.s32.totalorder %s116, %s130
      %p132 = scmp.eq.s32.totalorder %s24, 0
      %p133 = por %p131, %p132
      %s135 = sadd.s32 %s134, 1
      %p138 = scmp.eq.s32.totalorder %s18, 1
      %p139 = scmp.ne.s32.totalorder %s134, %s136
      %p140 = scmp.eq.s32.totalorder %s18, 0
      %p141 = por %p139, %p140
      %p142 = scmp.ne.s32.totalorder %s134, %s136
      %p143 = scmp.eq.s32.totalorder %s23, 1
      %p144 = por %p142, %p143
      %p145 = scmp.ne.s32.totalorder %s136, %s137
      %p146 = scmp.eq.s32.totalorder %s23, 0
      %p147 = por %p145, %p146
      %p148 = scmp.ne.s32.totalorder %s136, %s137
      %p149 = scmp.eq.s32.totalorder %s24, 1
      %p150 = por %p148, %p149
      %p152 = scmp.ne.s32.totalorder %s137, %s151
      %p153 = scmp.eq.s32.totalorder %s24, 0
      %p154 = por %p152, %p153
      %s156 = sadd.s32 %s155, 1
      %p159 = scmp.eq.s32.totalorder %s18, 1
      %p160 = scmp.ne.s32.totalorder %s155, %s157
      %p161 = scmp.eq.s32.totalorder %s18, 0
      %p162 = por %p160, %p161
      %p163 = scmp.ne.s32.totalorder %s155, %s157
      %p164 = scmp.eq.s32.totalorder %s23, 1
      %p165 = por %p163, %p164
      %p166 = scmp.ne.s32.totalorder %s157, %s158
      %p167 = scmp.eq.s32.totalorder %s23, 0
      %p168 = por %p166, %p167
      %p169 = scmp.ne.s32.totalorder %s157, %s158
      %p170 = scmp.eq.s32.totalorder %s24, 1
      %p171 = por %p169, %p170
      %p173 = scmp.ne.s32.totalorder %s158, %s172
      %p174 = scmp.eq.s32.totalorder %s24, 0
      %p175 = por %p173, %p174
      %s177 = sadd.s32 %s176, 1
      %p180 = scmp.eq.s32.totalorder %s18, 1
      %p181 = scmp.ne.s32.totalorder %s176, %s178
      %p182 = scmp.eq.s32.totalorder %s18, 0
      %p183 = por %p181, %p182
      %p184 = scmp.ne.s32.totalorder %s176, %s178
      %p185 = scmp.eq.s32.totalorder %s23, 1
      %p186 = por %p184, %p185
      %p187 = scmp.ne.s32.totalorder %s178, %s179
      %p188 = scmp.eq.s32.totalorder %s23, 0
      %p189 = por %p187, %p188
      %p190 = scmp.ne.s32.totalorder %s178, %s179
      %p191 = scmp.eq.s32.totalorder %s24, 1
      %p192 = por %p190, %p191
      %p194 = scmp.ne.s32.totalorder %s179, %s193
      %p195 = scmp.eq.s32.totalorder %s24, 0
      %p196 = por %p194, %p195
      %s197 = ssub.s32 %s25, %s37
      %s198 = ssub.s32 %s26, %s33
      %s199 = sor.u32 %s197, %s198
      %p200 = scmp.eq.s32.totalorder %s199, 0
      %s202 = sadd.s32 %s201, 1
      %s203 = scalar_select %p200, %s201, %s202
      %p206 = pneg %p200
      %p207 = scmp.eq.s32.totalorder %s18, 1
      %p208 = por %p206, %p207
      %p209 = scmp.ne.s32.totalorder %s201, %s204
      %p210 = scmp.eq.s32.totalorder %s18, 0
      %p211 = por %p209, %p210
      %p212 = scmp.ne.s32.totalorder %s201, %s204
      %p213 = scmp.eq.s32.totalorder %s23, 1
      %p214 = por %p212, %p213
      %p215 = scmp.ne.s32.totalorder %s204, %s205
      %p216 = scmp.eq.s32.totalorder %s23, 0
      %p217 = por %p215, %p216
      %p218 = scmp.ne.s32.totalorder %s204, %s205
      %p219 = scmp.eq.s32.totalorder %s24, 1
      %p220 = por %p218, %p219
      %p222 = scmp.ne.s32.totalorder %s205, %s221
      %p223 = scmp.eq.s32.totalorder %s24, 0
      %p224 = por %p222, %p223
      %p225 = scmp.le.s32.totalorder 1, %s18
      %p226 = scmp.lt.s32.totalorder %s18, 3
      %p227 = pnand %p225, %p226
      %p228 = pneg %p227
      // Predicated region
      $region9: #{tpu_custom_call.1} parent=5 // pred_check
        _
      $region10: #{tpu_custom_call.1} parent=5 // pred_check_branch
        %230 = sbr.rel (%p227) target = $region12
      $region11: #{tpu_custom_call.1} parent=5 // pred_region
        %s231 = ssub.s32 %s18, 1
        // Predicated region
        $region13: #{tpu_custom_call.1} parent=11 // pred_check
          %p232 = pneg %p105
        $region14: #{tpu_custom_call.1} parent=11 // pred_check_branch
          %234 = sbr.rel (%p232) target = $region16
        $region15: #{tpu_custom_call.1} parent=11 // pred_region
          _
        $region16: #{tpu_custom_call.1} parent=11 // pred_fallthru
          _
        // Predicated region
        $region17: #{tpu_custom_call.1} parent=11 // pred_check
          %p235 = pneg %p126
        $region18: #{tpu_custom_call.1} parent=11 // pred_check_branch
          %237 = sbr.rel (%p235) target = $region20
        $region19: #{tpu_custom_call.1} parent=11 // pred_region
          _
        $region20: #{tpu_custom_call.1} parent=11 // pred_fallthru
          _
        // Predicated region
        $region21: #{tpu_custom_call.1} parent=11 // pred_check
          %p238 = pneg %p147
        $region22: #{tpu_custom_call.1} parent=11 // pred_check_branch
          %240 = sbr.rel (%p238) target = $region24
        $region23: #{tpu_custom_call.1} parent=11 // pred_region
          _
        $region24: #{tpu_custom_call.1} parent=11 // pred_fallthru
          _
        // Predicated region
        $region25: #{tpu_custom_call.1} parent=11 // pred_check
          %p241 = pneg %p168
        $region26: #{tpu_custom_call.1} parent=11 // pred_check_branch
          %243 = sbr.rel (%p241) target = $region28
        $region27: #{tpu_custom_call.1} parent=11 // pred_region
          _
        $region28: #{tpu_custom_call.1} parent=11 // pred_fallthru
          _
        // Predicated region
        $region29: #{tpu_custom_call.1} parent=11 // pred_check
          %p244 = pneg %p189
        $region30: #{tpu_custom_call.1} parent=11 // pred_check_branch
          %246 = sbr.rel (%p244) target = $region32
        $region31: #{tpu_custom_call.1} parent=11 // pred_region
          _
        $region32: #{tpu_custom_call.1} parent=11 // pred_fallthru
          _
      $region12: #{tpu_custom_call.1} parent=5 // pred_fallthru
        _
      %p247 = scmp.lt.s32.totalorder %s18, 2
      // Predicated region
      $region33: #{tpu_custom_call.1} parent=5 // pred_check
        %p248 = pneg %p247
      $region34: #{tpu_custom_call.1} parent=5 // pred_check_branch
        %250 = sbr.rel (%p248) target = $region36
      $region35: #{tpu_custom_call.1} parent=5 // pred_region
        // Predicated region
        $region37: #{tpu_custom_call.1} parent=35 // pred_check
          %p251 = pneg %p52
        $region38: #{tpu_custom_call.1} parent=35 // pred_check_branch
          %253 = sbr.rel (%p251) target = $region40
        $region39: #{tpu_custom_call.1} parent=35 // pred_region
          %p254 = scmp.lt.s32.totalorder %s25, 1
          %s255 = scalar_select %p254, %s25, 1
          %p256 = scmp.lt.s32.totalorder %s26, 0
          %s257 = scalar_select %p256, %s26, 0
          %s258 = sadd.s32 %s257, %s255
          %s259 = scalar_lea.vmem %s0, %s258
        $region40: #{tpu_custom_call.1} parent=35 // pred_fallthru
          _
        // Predicated region
        $region41: #{tpu_custom_call.1} parent=35 // pred_check
          %p260 = pneg %p78
        $region42: #{tpu_custom_call.1} parent=35 // pred_check_branch
          %262 = sbr.rel (%p260) target = $region44
        $region43: #{tpu_custom_call.1} parent=35 // pred_region
          %p263 = scmp.lt.s32.totalorder %s25, 1
          %s264 = scalar_select %p263, %s25, 1
          %s265 = smul.addr %s264, 32
          %s266 = smul.addr %s265, 8
          %s267 = scalar_lea.vmem %s1, %s266
        $region44: #{tpu_custom_call.1} parent=35 // pred_fallthru
          _
      $region36: #{tpu_custom_call.1} parent=5 // pred_fallthru
        _
      %p268 = scmp.le.s32.totalorder 1, %s18
      %p269 = scmp.lt.s32.totalorder %s18, 3
      %p270 = pnand %p268, %p269
      %p271 = pneg %p270
      // Predicated region
      $region45: #{tpu_custom_call.1} parent=5 // pred_check
        _
      $region46: #{tpu_custom_call.1} parent=5 // pred_check_branch
        %273 = sbr.rel (%p270) target = $region48
      $region47: #{tpu_custom_call.1} parent=5 // pred_region
        %s274 = ssub.s32 %s18, 1
        %p275 = scmp.lt.s32.totalorder %s27, 1
        %s276 = scalar_select %p275, %s27, 1
        %p277 = scmp.lt.s32.totalorder %s28, 0
        %s278 = scalar_select %p277, %s28, 0
        %s279 = sadd.s32 %s278, %s276
        %s280 = scalar_lea.vmem %s0, %s279
        %p281 = pneg %p58
        %p282 = pneg %p55
        %p283 = scmp.lt.s32.totalorder %s27, 1
        %s284 = scalar_select %p283, %s27, 1
        %s285 = smul.addr %s284, 32
        %s286 = smul.addr %s285, 8
        %s287 = scalar_lea.vmem %s1, %s286
        %p288 = pneg %p84
        %p289 = pneg %p81
        %p290 = pneg %p105
        %p291 = pneg %p102
        %p292 = pneg %p126
        %p293 = pneg %p123
        %p294 = pneg %p147
        %p295 = pneg %p144
        %p296 = pneg %p168
        %p297 = pneg %p165
        %p298 = pneg %p189
        %p299 = pneg %p186
        %p300 = pneg %p217
        %p301 = pneg %p214
        %s302 = sand.u32 %s204, 1
        %s303 = scalar_lea.sflag [#allocation4], %s302
        %s304 = sand.u32 %s204, 1
        %s305 = scalar_lea.vmem [#allocation3], %s304
        %p306 = scmp.lt.s32.totalorder %s27, 1
        %s307 = scalar_select %p306, %s27, 1
        %p308 = scmp.lt.s32.totalorder %s28, 0
        %s309 = scalar_select %p308, %s28, 0
        %s310 = sadd.s32 %s309, %s307
        %s311 = scalar_lea.vmem %s0, %s310
        %p312 = scmp.lt.s32.totalorder %s27, 1
        %s313 = scalar_select %p312, %s27, 1
        %s314 = smul.addr %s313, 32
        %s315 = smul.addr %s314, 8
        %s316 = scalar_lea.vmem %s1, %s315
        %v317 = vld [vmem:[%s311] sm:$0x1]
        %v318 = vld [vmem:[%s316] sm:$0xff]
        %v319 = vld [vmem:[%s316 + $0x8] sm:$0xff]
        %v320 = vld [vmem:[%s316 + $0x10] sm:$0xff]
        %v321 = vld [vmem:[%s316 + $0x18] sm:$0xff]
        %v322 = vld [vmem:[%s316 + $0x20] sm:$0xff]
        %v323 = vld [vmem:[%s316 + $0x28] sm:$0xff]
        %v324 = vld [vmem:[%s316 + $0x30] sm:$0xff]
        %v325 = vld [vmem:[%s316 + $0x38] sm:$0xff]
        %v326 = vld [vmem:[%s316 + $0x40] sm:$0xff]
        %v327 = vld [vmem:[%s316 + $0x48] sm:$0xff]
        %v328 = vld [vmem:[%s316 + $0x50] sm:$0xff]
        %v329 = vld [vmem:[%s316 + $0x58] sm:$0xff]
        %v330 = vld [vmem:[%s316 + $0x60] sm:$0xff]
        %v331 = vld [vmem:[%s316 + $0x68] sm:$0xff]
        %v332 = vld [vmem:[%s316 + $0x70] sm:$0xff]
        %v333 = vld [vmem:[%s316 + $0x78] sm:$0xff]
        %v334 = vld [vmem:[%s316 + $0x80] sm:$0xff]
        %v335 = vld [vmem:[%s316 + $0x88] sm:$0xff]
        %v336 = vld [vmem:[%s316 + $0x90] sm:$0xff]
        %v337 = vld [vmem:[%s316 + $0x98] sm:$0xff]
        %v338 = vld [vmem:[%s316 + $0xa0] sm:$0xff]
        %v339 = vld [vmem:[%s316 + $0xa8] sm:$0xff]
        %v340 = vld [vmem:[%s316 + $0xb0] sm:$0xff]
        %v341 = vld [vmem:[%s316 + $0xb8] sm:$0xff]
        %v342 = vld [vmem:[%s316 + $0xc0] sm:$0xff]
        %v343 = vld [vmem:[%s316 + $0xc8] sm:$0xff]
        %v344 = vld [vmem:[%s316 + $0xd0] sm:$0xff]
        %v345 = vld [vmem:[%s316 + $0xd8] sm:$0xff]
        %v346 = vld [vmem:[%s316 + $0xe0] sm:$0xff]
        %v347 = vld [vmem:[%s316 + $0xe8] sm:$0xff]
        %v348 = vld [vmem:[%s316 + $0xf0] sm:$0xff]
        %v349 = vld [vmem:[%s316 + $0xf8] sm:$0xff]
        %v350 = vld [vmem:[%s2] sm:$0xff]
        %v351 = vld [vmem:[%s2 + $0x8] sm:$0xff]
        %v352 = vld [vmem:[%s2 + $0x10] sm:$0xff]
        %v353 = vld [vmem:[%s2 + $0x18] sm:$0xff]
        %v354 = vld [vmem:[%s2 + $0x20] sm:$0xff]
        %v355 = vld [vmem:[%s2 + $0x28] sm:$0xff]
        %v356 = vld [vmem:[%s2 + $0x30] sm:$0xff]
        %v357 = vld [vmem:[%s2 + $0x38] sm:$0xff]
        %v358 = vld [vmem:[%s2 + $0x40] sm:$0xff]
        %v359 = vld [vmem:[%s2 + $0x48] sm:$0xff]
        %v360 = vld [vmem:[%s2 + $0x50] sm:$0xff]
        %v361 = vld [vmem:[%s2 + $0x58] sm:$0xff]
        %v362 = vld [vmem:[%s2 + $0x60] sm:$0xff]
        %v363 = vld [vmem:[%s2 + $0x68] sm:$0xff]
        %v364 = vld [vmem:[%s2 + $0x70] sm:$0xff]
        %v365 = vld [vmem:[%s2 + $0x78] sm:$0xff]
        %v366 = vld [vmem:[%s2 + $0x80] sm:$0xff]
        %v367 = vld [vmem:[%s2 + $0x88] sm:$0xff]
        %v368 = vld [vmem:[%s2 + $0x90] sm:$0xff]
        %v369 = vld [vmem:[%s2 + $0x98] sm:$0xff]
        %v370 = vld [vmem:[%s2 + $0xa0] sm:$0xff]
        %v371 = vld [vmem:[%s2 + $0xa8] sm:$0xff]
        %v372 = vld [vmem:[%s2 + $0xb0] sm:$0xff]
        %v373 = vld [vmem:[%s2 + $0xb8] sm:$0xff]
        %v374 = vld [vmem:[%s2 + $0xc0] sm:$0xff]
        %v375 = vld [vmem:[%s2 + $0xc8] sm:$0xff]
        %v376 = vld [vmem:[%s2 + $0xd0] sm:$0xff]
        %v377 = vld [vmem:[%s2 + $0xd8] sm:$0xff]
        %v378 = vld [vmem:[%s2 + $0xe0] sm:$0xff]
        %v379 = vld [vmem:[%s2 + $0xe8] sm:$0xff]
        %v380 = vld [vmem:[%s2 + $0xf0] sm:$0xff]
        %v381 = vld [vmem:[%s2 + $0xf8] sm:$0xff]
        %383 = vset.pattern.permute.xlu0 0
        %384 = vperm.xlu0 %383, %v350
        %v385 = vpop.permute.xlu0 %384
        %388 = vset.pattern.permute.xlu0 0
        %389 = vperm.xlu0 %388, %v351
        %v390 = vpop.permute.xlu0 %389
        %393 = vset.pattern.permute.xlu0 0
        %394 = vperm.xlu0 %393, %v352
        %v395 = vpop.permute.xlu0 %394
        %398 = vset.pattern.permute.xlu0 0
        %399 = vperm.xlu0 %398, %v353
        %v400 = vpop.permute.xlu0 %399
        %403 = vset.pattern.permute.xlu0 0
        %404 = vperm.xlu0 %403, %v354
        %v405 = vpop.permute.xlu0 %404
        %408 = vset.pattern.permute.xlu0 0
        %409 = vperm.xlu0 %408, %v355
        %v410 = vpop.permute.xlu0 %409
        %413 = vset.pattern.permute.xlu0 0
        %414 = vperm.xlu0 %413, %v356
        %v415 = vpop.permute.xlu0 %414
        %418 = vset.pattern.permute.xlu0 0
        %419 = vperm.xlu0 %418, %v357
        %v420 = vpop.permute.xlu0 %419
        %423 = vset.pattern.permute.xlu0 0
        %424 = vperm.xlu0 %423, %v358
        %v425 = vpop.permute.xlu0 %424
        %428 = vset.pattern.permute.xlu0 0
        %429 = vperm.xlu0 %428, %v359
        %v430 = vpop.permute.xlu0 %429
        %433 = vset.pattern.permute.xlu0 0
        %434 = vperm.xlu0 %433, %v360
        %v435 = vpop.permute.xlu0 %434
        %438 = vset.pattern.permute.xlu0 0
        %439 = vperm.xlu0 %438, %v361
        %v440 = vpop.permute.xlu0 %439
        %443 = vset.pattern.permute.xlu0 0
        %444 = vperm.xlu0 %443, %v362
        %v445 = vpop.permute.xlu0 %444
        %448 = vset.pattern.permute.xlu0 0
        %449 = vperm.xlu0 %448, %v363
        %v450 = vpop.permute.xlu0 %449
        %453 = vset.pattern.permute.xlu0 0
        %454 = vperm.xlu0 %453, %v364
        %v455 = vpop.permute.xlu0 %454
        %458 = vset.pattern.permute.xlu0 0
        %459 = vperm.xlu0 %458, %v365
        %v460 = vpop.permute.xlu0 %459
        %463 = vset.pattern.permute.xlu0 0
        %464 = vperm.xlu0 %463, %v366
        %v465 = vpop.permute.xlu0 %464
        %468 = vset.pattern.permute.xlu0 0
        %469 = vperm.xlu0 %468, %v367
        %v470 = vpop.permute.xlu0 %469
        %473 = vset.pattern.permute.xlu0 0
        %474 = vperm.xlu0 %473, %v368
        %v475 = vpop.permute.xlu0 %474
        %478 = vset.pattern.permute.xlu0 0
        %479 = vperm.xlu0 %478, %v369
        %v480 = vpop.permute.xlu0 %479
        %483 = vset.pattern.permute.xlu0 0
        %484 = vperm.xlu0 %483, %v370
        %v485 = vpop.permute.xlu0 %484
        %488 = vset.pattern.permute.xlu0 0
        %489 = vperm.xlu0 %488, %v371
        %v490 = vpop.permute.xlu0 %489
        %493 = vset.pattern.permute.xlu0 0
        %494 = vperm.xlu0 %493, %v372
        %v495 = vpop.permute.xlu0 %494
        %498 = vset.pattern.permute.xlu0 0
        %499 = vperm.xlu0 %498, %v373
        %v500 = vpop.permute.xlu0 %499
        %503 = vset.pattern.permute.xlu0 0
        %504 = vperm.xlu0 %503, %v374
        %v505 = vpop.permute.xlu0 %504
        %508 = vset.pattern.permute.xlu0 0
        %509 = vperm.xlu0 %508, %v375
        %v510 = vpop.permute.xlu0 %509
        %513 = vset.pattern.permute.xlu0 0
        %514 = vperm.xlu0 %513, %v376
        %v515 = vpop.permute.xlu0 %514
        %518 = vset.pattern.permute.xlu0 0
        %519 = vperm.xlu0 %518, %v377
        %v520 = vpop.permute.xlu0 %519
        %523 = vset.pattern.permute.xlu0 0
        %524 = vperm.xlu0 %523, %v378
        %v525 = vpop.permute.xlu0 %524
        %528 = vset.pattern.permute.xlu0 0
        %529 = vperm.xlu0 %528, %v379
        %v530 = vpop.permute.xlu0 %529
        %533 = vset.pattern.permute.xlu0 0
        %534 = vperm.xlu0 %533, %v380
        %v535 = vpop.permute.xlu0 %534
        %538 = vset.pattern.permute.xlu0 0
        %539 = vperm.xlu0 %538, %v381
        %v540 = vpop.permute.xlu0 %539
        %v543 = vperm.slane %v317, 0
        %v545 = vmul.f32 %v385, %v543
        %v546 = vmul.f32 %v390, %v543
        %v547 = vmul.f32 %v395, %v543
        %v548 = vmul.f32 %v400, %v543
        %v549 = vmul.f32 %v405, %v543
        %v550 = vmul.f32 %v410, %v543
        %v551 = vmul.f32 %v415, %v543
        %v552 = vmul.f32 %v420, %v543
        %v553 = vmul.f32 %v425, %v543
        %v554 = vmul.f32 %v430, %v543
        %v555 = vmul.f32 %v435, %v543
        %v556 = vmul.f32 %v440, %v543
        %v557 = vmul.f32 %v445, %v543
        %v558 = vmul.f32 %v450, %v543
        %v559 = vmul.f32 %v455, %v543
        %v560 = vmul.f32 %v460, %v543
        %v561 = vmul.f32 %v465, %v543
        %v562 = vmul.f32 %v470, %v543
        %v563 = vmul.f32 %v475, %v543
        %v564 = vmul.f32 %v480, %v543
        %v565 = vmul.f32 %v485, %v543
        %v566 = vmul.f32 %v490, %v543
        %v567 = vmul.f32 %v495, %v543
        %v568 = vmul.f32 %v500, %v543
        %v569 = vmul.f32 %v505, %v543
        %v570 = vmul.f32 %v510, %v543
        %v571 = vmul.f32 %v515, %v543
        %v572 = vmul.f32 %v520, %v543
        %v573 = vmul.f32 %v525, %v543
        %v574 = vmul.f32 %v530, %v543
        %v575 = vmul.f32 %v535, %v543
        %v576 = vmul.f32 %v540, %v543
        %578 = vset.pattern.permute.xlu0 0
        %579 = vperm.xlu0 %578, %v318
        %v580 = vpop.permute.xlu0 %579
        %583 = vset.pattern.permute.xlu0 0
        %584 = vperm.xlu0 %583, %v319
        %v585 = vpop.permute.xlu0 %584
        %588 = vset.pattern.permute.xlu0 0
        %589 = vperm.xlu0 %588, %v320
        %v590 = vpop.permute.xlu0 %589
        %593 = vset.pattern.permute.xlu0 0
        %594 = vperm.xlu0 %593, %v321
        %v595 = vpop.permute.xlu0 %594
        %598 = vset.pattern.permute.xlu0 0
        %599 = vperm.xlu0 %598, %v322
        %v600 = vpop.permute.xlu0 %599
        %603 = vset.pattern.permute.xlu0 0
        %604 = vperm.xlu0 %603, %v323
        %v605 = vpop.permute.xlu0 %604
        %608 = vset.pattern.permute.xlu0 0
        %609 = vperm.xlu0 %608, %v324
        %v610 = vpop.permute.xlu0 %609
        %613 = vset.pattern.permute.xlu0 0
        %614 = vperm.xlu0 %613, %v325
        %v615 = vpop.permute.xlu0 %614
        %618 = vset.pattern.permute.xlu0 0
        %619 = vperm.xlu0 %618, %v326
        %v620 = vpop.permute.xlu0 %619
        %623 = vset.pattern.permute.xlu0 0
        %624 = vperm.xlu0 %623, %v327
        %v625 = vpop.permute.xlu0 %624
        %628 = vset.pattern.permute.xlu0 0
        %629 = vperm.xlu0 %628, %v328
        %v630 = vpop.permute.xlu0 %629
        %633 = vset.pattern.permute.xlu0 0
        %634 = vperm.xlu0 %633, %v329
        %v635 = vpop.permute.xlu0 %634
        %638 = vset.pattern.permute.xlu0 0
        %639 = vperm.xlu0 %638, %v330
        %v640 = vpop.permute.xlu0 %639
        %643 = vset.pattern.permute.xlu0 0
        %644 = vperm.xlu0 %643, %v331
        %v645 = vpop.permute.xlu0 %644
        %648 = vset.pattern.permute.xlu0 0
        %649 = vperm.xlu0 %648, %v332
        %v650 = vpop.permute.xlu0 %649
        %653 = vset.pattern.permute.xlu0 0
        %654 = vperm.xlu0 %653, %v333
        %v655 = vpop.permute.xlu0 %654
        %658 = vset.pattern.permute.xlu0 0
        %659 = vperm.xlu0 %658, %v334
        %v660 = vpop.permute.xlu0 %659
        %663 = vset.pattern.permute.xlu0 0
        %664 = vperm.xlu0 %663, %v335
        %v665 = vpop.permute.xlu0 %664
        %668 = vset.pattern.permute.xlu0 0
        %669 = vperm.xlu0 %668, %v336
        %v670 = vpop.permute.xlu0 %669
        %673 = vset.pattern.permute.xlu0 0
        %674 = vperm.xlu0 %673, %v337
        %v675 = vpop.permute.xlu0 %674
        %678 = vset.pattern.permute.xlu0 0
        %679 = vperm.xlu0 %678, %v338
        %v680 = vpop.permute.xlu0 %679
        %683 = vset.pattern.permute.xlu0 0
        %684 = vperm.xlu0 %683, %v339
        %v685 = vpop.permute.xlu0 %684
        %688 = vset.pattern.permute.xlu0 0
        %689 = vperm.xlu0 %688, %v340
        %v690 = vpop.permute.xlu0 %689
        %693 = vset.pattern.permute.xlu0 0
        %694 = vperm.xlu0 %693, %v341
        %v695 = vpop.permute.xlu0 %694
        %698 = vset.pattern.permute.xlu0 0
        %699 = vperm.xlu0 %698, %v342
        %v700 = vpop.permute.xlu0 %699
        %703 = vset.pattern.permute.xlu0 0
        %704 = vperm.xlu0 %703, %v343
        %v705 = vpop.permute.xlu0 %704
        %708 = vset.pattern.permute.xlu0 0
        %709 = vperm.xlu0 %708, %v344
        %v710 = vpop.permute.xlu0 %709
        %713 = vset.pattern.permute.xlu0 0
        %714 = vperm.xlu0 %713, %v345
        %v715 = vpop.permute.xlu0 %714
        %718 = vset.pattern.permute.xlu0 0
        %719 = vperm.xlu0 %718, %v346
        %v720 = vpop.permute.xlu0 %719
        %723 = vset.pattern.permute.xlu0 0
        %724 = vperm.xlu0 %723, %v347
        %v725 = vpop.permute.xlu0 %724
        %728 = vset.pattern.permute.xlu0 0
        %729 = vperm.xlu0 %728, %v348
        %v730 = vpop.permute.xlu0 %729
        %733 = vset.pattern.permute.xlu0 0
        %734 = vperm.xlu0 %733, %v349
        %v735 = vpop.permute.xlu0 %734
        %v737 = vadd.f32 %v545, %v580
        %v738 = vadd.f32 %v546, %v585
        %v739 = vadd.f32 %v547, %v590
        %v740 = vadd.f32 %v548, %v595
        %v741 = vadd.f32 %v549, %v600
        %v742 = vadd.f32 %v550, %v605
        %v743 = vadd.f32 %v551, %v610
        %v744 = vadd.f32 %v552, %v615
        %v745 = vadd.f32 %v553, %v620
        %v746 = vadd.f32 %v554, %v625
        %v747 = vadd.f32 %v555, %v630
        %v748 = vadd.f32 %v556, %v635
        %v749 = vadd.f32 %v557, %v640
        %v750 = vadd.f32 %v558, %v645
        %v751 = vadd.f32 %v559, %v650
        %v752 = vadd.f32 %v560, %v655
        %v753 = vadd.f32 %v561, %v660
        %v754 = vadd.f32 %v562, %v665
        %v755 = vadd.f32 %v563, %v670
        %v756 = vadd.f32 %v564, %v675
        %v757 = vadd.f32 %v565, %v680
        %v758 = vadd.f32 %v566, %v685
        %v759 = vadd.f32 %v567, %v690
        %v760 = vadd.f32 %v568, %v695
        %v761 = vadd.f32 %v569, %v700
        %v762 = vadd.f32 %v570, %v705
        %v763 = vadd.f32 %v571, %v710
        %v764 = vadd.f32 %v572, %v715
        %v765 = vadd.f32 %v573, %v720
        %v766 = vadd.f32 %v574, %v725
        %v767 = vadd.f32 %v575, %v730
        %v768 = vadd.f32 %v576, %v735
        %v769 = vmul.f32 %v737, 0.01
        %v770 = vmul.f32 %v738, 0.01
        %v771 = vmul.f32 %v739, 0.01
        %v772 = vmul.f32 %v740, 0.01
        %v773 = vmul.f32 %v741, 0.01
        %v774 = vmul.f32 %v742, 0.01
        %v775 = vmul.f32 %v743, 0.01
        %v776 = vmul.f32 %v744, 0.01
        %v777 = vmul.f32 %v745, 0.01
        %v778 = vmul.f32 %v746, 0.01
        %v779 = vmul.f32 %v747, 0.01
        %v780 = vmul.f32 %v748, 0.01
        %v781 = vmul.f32 %v749, 0.01
        %v782 = vmul.f32 %v750, 0.01
        %v783 = vmul.f32 %v751, 0.01
        %v784 = vmul.f32 %v752, 0.01
        %v785 = vmul.f32 %v753, 0.01
        %v786 = vmul.f32 %v754, 0.01
        %v787 = vmul.f32 %v755, 0.01
        %v788 = vmul.f32 %v756, 0.01
        %v789 = vmul.f32 %v757, 0.01
        %v790 = vmul.f32 %v758, 0.01
        %v791 = vmul.f32 %v759, 0.01
        %v792 = vmul.f32 %v760, 0.01
        %v793 = vmul.f32 %v761, 0.01
        %v794 = vmul.f32 %v762, 0.01
        %v795 = vmul.f32 %v763, 0.01
        %v796 = vmul.f32 %v764, 0.01
        %v797 = vmul.f32 %v765, 0.01
        %v798 = vmul.f32 %v766, 0.01
        %v799 = vmul.f32 %v767, 0.01
        %v800 = vmul.f32 %v768, 0.01
        %v801 = vmax.f32 %v737, %v769
        %v802 = vmax.f32 %v738, %v770
        %v803 = vmax.f32 %v739, %v771
        %v804 = vmax.f32 %v740, %v772
        %v805 = vmax.f32 %v741, %v773
        %v806 = vmax.f32 %v742, %v774
        %v807 = vmax.f32 %v743, %v775
        %v808 = vmax.f32 %v744, %v776
        %v809 = vmax.f32 %v745, %v777
        %v810 = vmax.f32 %v746, %v778
        %v811 = vmax.f32 %v747, %v779
        %v812 = vmax.f32 %v748, %v780
        %v813 = vmax.f32 %v749, %v781
        %v814 = vmax.f32 %v750, %v782
        %v815 = vmax.f32 %v751, %v783
        %v816 = vmax.f32 %v752, %v784
        %v817 = vmax.f32 %v753, %v785
        %v818 = vmax.f32 %v754, %v786
        %v819 = vmax.f32 %v755, %v787
        %v820 = vmax.f32 %v756, %v788
        %v821 = vmax.f32 %v757, %v789
        %v822 = vmax.f32 %v758, %v790
        %v823 = vmax.f32 %v759, %v791
        %v824 = vmax.f32 %v760, %v792
        %v825 = vmax.f32 %v761, %v793
        %v826 = vmax.f32 %v762, %v794
        %v827 = vmax.f32 %v763, %v795
        %v828 = vmax.f32 %v764, %v796
        %v829 = vmax.f32 %v765, %v797
        %v830 = vmax.f32 %v766, %v798
        %v831 = vmax.f32 %v767, %v799
        %v832 = vmax.f32 %v768, %v800
        %v833 = vld [vmem:[%s3] sm:$0xff]
        %v834 = vld [vmem:[%s3 + $0x8] sm:$0xff]
        %v835 = vld [vmem:[%s3 + $0x10] sm:$0xff]
        %v836 = vld [vmem:[%s3 + $0x18] sm:$0xff]
        %v837 = vld [vmem:[%s3 + $0x20] sm:$0xff]
        %v838 = vld [vmem:[%s3 + $0x28] sm:$0xff]
        %v839 = vld [vmem:[%s3 + $0x30] sm:$0xff]
        %v840 = vld [vmem:[%s3 + $0x38] sm:$0xff]
        %v841 = vld [vmem:[%s3 + $0x40] sm:$0xff]
        %v842 = vld [vmem:[%s3 + $0x48] sm:$0xff]
        %v843 = vld [vmem:[%s3 + $0x50] sm:$0xff]
        %v844 = vld [vmem:[%s3 + $0x58] sm:$0xff]
        %v845 = vld [vmem:[%s3 + $0x60] sm:$0xff]
        %v846 = vld [vmem:[%s3 + $0x68] sm:$0xff]
        %v847 = vld [vmem:[%s3 + $0x70] sm:$0xff]
        %v848 = vld [vmem:[%s3 + $0x78] sm:$0xff]
        %v849 = vld [vmem:[%s3 + $0x80] sm:$0xff]
        %v850 = vld [vmem:[%s3 + $0x88] sm:$0xff]
        %v851 = vld [vmem:[%s3 + $0x90] sm:$0xff]
        %v852 = vld [vmem:[%s3 + $0x98] sm:$0xff]
        %v853 = vld [vmem:[%s3 + $0xa0] sm:$0xff]
        %v854 = vld [vmem:[%s3 + $0xa8] sm:$0xff]
        %v855 = vld [vmem:[%s3 + $0xb0] sm:$0xff]
        %v856 = vld [vmem:[%s3 + $0xb8] sm:$0xff]
        %v857 = vld [vmem:[%s3 + $0xc0] sm:$0xff]
        %v858 = vld [vmem:[%s3 + $0xc8] sm:$0xff]
        %v859 = vld [vmem:[%s3 + $0xd0] sm:$0xff]
        %v860 = vld [vmem:[%s3 + $0xd8] sm:$0xff]
        %v861 = vld [vmem:[%s3 + $0xe0] sm:$0xff]
        %v862 = vld [vmem:[%s3 + $0xe8] sm:$0xff]
        %v863 = vld [vmem:[%s3 + $0xf0] sm:$0xff]
        %v864 = vld [vmem:[%s3 + $0xf8] sm:$0xff]
        %v865 = vld [vmem:[%s4] sm:$0xff]
        %v866 = vld [vmem:[%s4 + $0x8] sm:$0xff]
        %v867 = vld [vmem:[%s4 + $0x10] sm:$0xff]
        %v868 = vld [vmem:[%s4 + $0x18] sm:$0xff]
        %v869 = vld [vmem:[%s4 + $0x20] sm:$0xff]
        %v870 = vld [vmem:[%s4 + $0x28] sm:$0xff]
        %v871 = vld [vmem:[%s4 + $0x30] sm:$0xff]
        %v872 = vld [vmem:[%s4 + $0x38] sm:$0xff]
        %v873 = vld [vmem:[%s4 + $0x40] sm:$0xff]
        %v874 = vld [vmem:[%s4 + $0x48] sm:$0xff]
        %v875 = vld [vmem:[%s4 + $0x50] sm:$0xff]
        %v876 = vld [vmem:[%s4 + $0x58] sm:$0xff]
        %v877 = vld [vmem:[%s4 + $0x60] sm:$0xff]
        %v878 = vld [vmem:[%s4 + $0x68] sm:$0xff]
        %v879 = vld [vmem:[%s4 + $0x70] sm:$0xff]
        %v880 = vld [vmem:[%s4 + $0x78] sm:$0xff]
        %882 = vset.pattern.permute.xlu0 0
        %883 = vperm.xlu0 %882, %v865
        %v884 = vpop.permute.xlu0 %883
        %887 = vset.pattern.permute.xlu0 0
        %888 = vperm.xlu0 %887, %v866
        %v889 = vpop.permute.xlu0 %888
        %892 = vset.pattern.permute.xlu0 0
        %893 = vperm.xlu0 %892, %v867
        %v894 = vpop.permute.xlu0 %893
        %897 = vset.pattern.permute.xlu0 0
        %898 = vperm.xlu0 %897, %v868
        %v899 = vpop.permute.xlu0 %898
        %902 = vset.pattern.permute.xlu0 0
        %903 = vperm.xlu0 %902, %v869
        %v904 = vpop.permute.xlu0 %903
        %907 = vset.pattern.permute.xlu0 0
        %908 = vperm.xlu0 %907, %v870
        %v909 = vpop.permute.xlu0 %908
        %912 = vset.pattern.permute.xlu0 0
        %913 = vperm.xlu0 %912, %v871
        %v914 = vpop.permute.xlu0 %913
        %917 = vset.pattern.permute.xlu0 0
        %918 = vperm.xlu0 %917, %v872
        %v919 = vpop.permute.xlu0 %918
        %922 = vset.pattern.permute.xlu0 0
        %923 = vperm.xlu0 %922, %v873
        %v924 = vpop.permute.xlu0 %923
        %927 = vset.pattern.permute.xlu0 0
        %928 = vperm.xlu0 %927, %v874
        %v929 = vpop.permute.xlu0 %928
        %932 = vset.pattern.permute.xlu0 0
        %933 = vperm.xlu0 %932, %v875
        %v934 = vpop.permute.xlu0 %933
        %937 = vset.pattern.permute.xlu0 0
        %938 = vperm.xlu0 %937, %v876
        %v939 = vpop.permute.xlu0 %938
        %942 = vset.pattern.permute.xlu0 0
        %943 = vperm.xlu0 %942, %v877
        %v944 = vpop.permute.xlu0 %943
        %947 = vset.pattern.permute.xlu0 0
        %948 = vperm.xlu0 %947, %v878
        %v949 = vpop.permute.xlu0 %948
        %952 = vset.pattern.permute.xlu0 0
        %953 = vperm.xlu0 %952, %v879
        %v954 = vpop.permute.xlu0 %953
        %957 = vset.pattern.permute.xlu0 0
        %958 = vperm.xlu0 %957, %v880
        %v959 = vpop.permute.xlu0 %958
        %961 = vmatpush.msra.mxu0 %v816
        %962 = vmatpush.msra.mxu0 %v815
        %963 = vmatpush.msra.mxu0 %v814
        %964 = vmatpush.msra.mxu0 %v813
        %965 = vmatpush.msra.mxu0 %v812
        %966 = vmatpush.msra.mxu0 %v811
        %967 = vmatpush.msra.mxu0 %v810
        %968 = vmatpush.msra.mxu0 %v809
        %969 = vmatpush.msra.mxu0 %v808
        %970 = vmatpush.msra.mxu0 %v807
        %971 = vmatpush.msra.mxu0 %v806
        %972 = vmatpush.msra.mxu0 %v805
        %973 = vmatpush.msra.mxu0 %v804
        %974 = vmatpush.msra.mxu0 %v803
        %975 = vmatpush.msra.mxu0 %v802
        %976 = vmatpush.msra.mxu0 %v801
        %977 = vmatmul.f32.gmra.mxu0 %v833
        %v978 = vpop.f32.mrf.mxu0
        %v979 = vadd.f32 %v884, %v978
        %980 = vmatmul.f32.gmra.mxu0 %v835
        %v981 = vpop.f32.mrf.mxu0
        %v982 = vadd.f32 %v889, %v981
        %983 = vmatmul.f32.gmra.mxu0 %v837
        %v984 = vpop.f32.mrf.mxu0
        %v985 = vadd.f32 %v894, %v984
        %986 = vmatmul.f32.gmra.mxu0 %v839
        %v987 = vpop.f32.mrf.mxu0
        %v988 = vadd.f32 %v899, %v987
        %989 = vmatmul.f32.gmra.mxu0 %v841
        %v990 = vpop.f32.mrf.mxu0
        %v991 = vadd.f32 %v904, %v990
        %992 = vmatmul.f32.gmra.mxu0 %v843
        %v993 = vpop.f32.mrf.mxu0
        %v994 = vadd.f32 %v909, %v993
        %995 = vmatmul.f32.gmra.mxu0 %v845
        %v996 = vpop.f32.mrf.mxu0
        %v997 = vadd.f32 %v914, %v996
        %998 = vmatmul.f32.gmra.mxu0 %v847
        %v999 = vpop.f32.mrf.mxu0
        %v1000 = vadd.f32 %v919, %v999
        %1001 = vmatmul.f32.gmra.mxu0 %v849
        %v1002 = vpop.f32.mrf.mxu0
        %v1003 = vadd.f32 %v924, %v1002
        %1004 = vmatmul.f32.gmra.mxu0 %v851
        %v1005 = vpop.f32.mrf.mxu0
        %v1006 = vadd.f32 %v929, %v1005
        %1007 = vmatmul.f32.gmra.mxu0 %v853
        %v1008 = vpop.f32.mrf.mxu0
        %v1009 = vadd.f32 %v934, %v1008
        %1010 = vmatmul.f32.gmra.mxu0 %v855
        %v1011 = vpop.f32.mrf.mxu0
        %v1012 = vadd.f32 %v939, %v1011
        %1013 = vmatmul.f32.gmra.mxu0 %v857
        %v1014 = vpop.f32.mrf.mxu0
        %v1015 = vadd.f32 %v944, %v1014
        %1016 = vmatmul.f32.gmra.mxu0 %v859
        %v1017 = vpop.f32.mrf.mxu0
        %v1018 = vadd.f32 %v949, %v1017
        %1019 = vmatmul.f32.gmra.mxu0 %v861
        %v1020 = vpop.f32.mrf.mxu0
        %v1021 = vadd.f32 %v954, %v1020
        %1022 = vmatmul.f32.gmra.mxu0 %v863
        %v1023 = vpop.f32.mrf.mxu0
        %v1024 = vadd.f32 %v959, %v1023
        %1025 = vdwg.mxu0
        %1026 = vmatpush.msra.mxu0 %v832
        %1027 = vmatpush.msra.mxu0 %v831
        %1028 = vmatpush.msra.mxu0 %v830
        %1029 = vmatpush.msra.mxu0 %v829
        %1030 = vmatpush.msra.mxu0 %v828
        %1031 = vmatpush.msra.mxu0 %v827
        %1032 = vmatpush.msra.mxu0 %v826
        %1033 = vmatpush.msra.mxu0 %v825
        %1034 = vmatpush.msra.mxu0 %v824
        %1035 = vmatpush.msra.mxu0 %v823
        %1036 = vmatpush.msra.mxu0 %v822
        %1037 = vmatpush.msra.mxu0 %v821
        %1038 = vmatpush.msra.mxu0 %v820
        %1039 = vmatpush.msra.mxu0 %v819
        %1040 = vmatpush.msra.mxu0 %v818
        %1041 = vmatpush.msra.mxu0 %v817
        %1042 = vmatmul.f32.gmra.mxu0 %v834
        %v1043 = vpop.f32.mrf.mxu0
        %v1044 = vadd.f32 %v979, %v1043
        %1045 = vmatmul.f32.gmra.mxu0 %v836
        %v1046 = vpop.f32.mrf.mxu0
        %v1047 = vadd.f32 %v982, %v1046
        %1048 = vmatmul.f32.gmra.mxu0 %v838
        %v1049 = vpop.f32.mrf.mxu0
        %v1050 = vadd.f32 %v985, %v1049
        %1051 = vmatmul.f32.gmra.mxu0 %v840
        %v1052 = vpop.f32.mrf.mxu0
        %v1053 = vadd.f32 %v988, %v1052
        %1054 = vmatmul.f32.gmra.mxu0 %v842
        %v1055 = vpop.f32.mrf.mxu0
        %v1056 = vadd.f32 %v991, %v1055
        %1057 = vmatmul.f32.gmra.mxu0 %v844
        %v1058 = vpop.f32.mrf.mxu0
        %v1059 = vadd.f32 %v994, %v1058
        %1060 = vmatmul.f32.gmra.mxu0 %v846
        %v1061 = vpop.f32.mrf.mxu0
        %v1062 = vadd.f32 %v997, %v1061
        %1063 = vmatmul.f32.gmra.mxu0 %v848
        %v1064 = vpop.f32.mrf.mxu0
        %v1065 = vadd.f32 %v1000, %v1064
        %1066 = vmatmul.f32.gmra.mxu0 %v850
        %v1067 = vpop.f32.mrf.mxu0
        %v1068 = vadd.f32 %v1003, %v1067
        %1069 = vmatmul.f32.gmra.mxu0 %v852
        %v1070 = vpop.f32.mrf.mxu0
        %v1071 = vadd.f32 %v1006, %v1070
        %1072 = vmatmul.f32.gmra.mxu0 %v854
        %v1073 = vpop.f32.mrf.mxu0
        %v1074 = vadd.f32 %v1009, %v1073
        %1075 = vmatmul.f32.gmra.mxu0 %v856
        %v1076 = vpop.f32.mrf.mxu0
        %v1077 = vadd.f32 %v1012, %v1076
        %1078 = vmatmul.f32.gmra.mxu0 %v858
        %v1079 = vpop.f32.mrf.mxu0
        %v1080 = vadd.f32 %v1015, %v1079
        %1081 = vmatmul.f32.gmra.mxu0 %v860
        %v1082 = vpop.f32.mrf.mxu0
        %v1083 = vadd.f32 %v1018, %v1082
        %1084 = vmatmul.f32.gmra.mxu0 %v862
        %v1085 = vpop.f32.mrf.mxu0
        %v1086 = vadd.f32 %v1021, %v1085
        %1087 = vmatmul.f32.gmra.mxu0 %v864
        %v1088 = vpop.f32.mrf.mxu0
        %v1089 = vadd.f32 %v1024, %v1088
        %1090 = vdwg.mxu0
        %v1091 = vmul.f32 %v1044, 0.01
        %v1092 = vmul.f32 %v1047, 0.01
        %v1093 = vmul.f32 %v1050, 0.01
        %v1094 = vmul.f32 %v1053, 0.01
        %v1095 = vmul.f32 %v1056, 0.01
        %v1096 = vmul.f32 %v1059, 0.01
        %v1097 = vmul.f32 %v1062, 0.01
        %v1098 = vmul.f32 %v1065, 0.01
        %v1099 = vmul.f32 %v1068, 0.01
        %v1100 = vmul.f32 %v1071, 0.01
        %v1101 = vmul.f32 %v1074, 0.01
        %v1102 = vmul.f32 %v1077, 0.01
        %v1103 = vmul.f32 %v1080, 0.01
        %v1104 = vmul.f32 %v1083, 0.01
        %v1105 = vmul.f32 %v1086, 0.01
        %v1106 = vmul.f32 %v1089, 0.01
        %v1107 = vmax.f32 %v1044, %v1091
        %v1108 = vmax.f32 %v1047, %v1092
        %v1109 = vmax.f32 %v1050, %v1093
        %v1110 = vmax.f32 %v1053, %v1094
        %v1111 = vmax.f32 %v1056, %v1095
        %v1112 = vmax.f32 %v1059, %v1096
        %v1113 = vmax.f32 %v1062, %v1097
        %v1114 = vmax.f32 %v1065, %v1098
        %v1115 = vmax.f32 %v1068, %v1099
        %v1116 = vmax.f32 %v1071, %v1100
        %v1117 = vmax.f32 %v1074, %v1101
        %v1118 = vmax.f32 %v1077, %v1102
        %v1119 = vmax.f32 %v1080, %v1103
        %v1120 = vmax.f32 %v1083, %v1104
        %v1121 = vmax.f32 %v1086, %v1105
        %v1122 = vmax.f32 %v1089, %v1106
        %v1123 = vld [vmem:[%s5] sm:$0xff]
        %v1124 = vld [vmem:[%s5 + $0x8] sm:$0xff]
        %v1125 = vld [vmem:[%s5 + $0x10] sm:$0xff]
        %v1126 = vld [vmem:[%s5 + $0x18] sm:$0xff]
        %v1127 = vld [vmem:[%s5 + $0x20] sm:$0xff]
        %v1128 = vld [vmem:[%s5 + $0x28] sm:$0xff]
        %v1129 = vld [vmem:[%s5 + $0x30] sm:$0xff]
        %v1130 = vld [vmem:[%s5 + $0x38] sm:$0xff]
        %v1131 = vld [vmem:[%s5 + $0x40] sm:$0xff]
        %v1132 = vld [vmem:[%s5 + $0x48] sm:$0xff]
        %v1133 = vld [vmem:[%s5 + $0x50] sm:$0xff]
        %v1134 = vld [vmem:[%s5 + $0x58] sm:$0xff]
        %v1135 = vld [vmem:[%s5 + $0x60] sm:$0xff]
        %v1136 = vld [vmem:[%s5 + $0x68] sm:$0xff]
        %v1137 = vld [vmem:[%s5 + $0x70] sm:$0xff]
        %v1138 = vld [vmem:[%s5 + $0x78] sm:$0xff]
        %1140 = vset.pattern.permute.xlu0 0
        %1141 = vperm.xlu0 %1140, %v1123
        %v1142 = vpop.permute.xlu0 %1141
        %1145 = vset.pattern.permute.xlu0 0
        %1146 = vperm.xlu0 %1145, %v1124
        %v1147 = vpop.permute.xlu0 %1146
        %1150 = vset.pattern.permute.xlu0 0
        %1151 = vperm.xlu0 %1150, %v1125
        %v1152 = vpop.permute.xlu0 %1151
        %1155 = vset.pattern.permute.xlu0 0
        %1156 = vperm.xlu0 %1155, %v1126
        %v1157 = vpop.permute.xlu0 %1156
        %1160 = vset.pattern.permute.xlu0 0
        %1161 = vperm.xlu0 %1160, %v1127
        %v1162 = vpop.permute.xlu0 %1161
        %1165 = vset.pattern.permute.xlu0 0
        %1166 = vperm.xlu0 %1165, %v1128
        %v1167 = vpop.permute.xlu0 %1166
        %1170 = vset.pattern.permute.xlu0 0
        %1171 = vperm.xlu0 %1170, %v1129
        %v1172 = vpop.permute.xlu0 %1171
        %1175 = vset.pattern.permute.xlu0 0
        %1176 = vperm.xlu0 %1175, %v1130
        %v1177 = vpop.permute.xlu0 %1176
        %1180 = vset.pattern.permute.xlu0 0
        %1181 = vperm.xlu0 %1180, %v1131
        %v1182 = vpop.permute.xlu0 %1181
        %1185 = vset.pattern.permute.xlu0 0
        %1186 = vperm.xlu0 %1185, %v1132
        %v1187 = vpop.permute.xlu0 %1186
        %1190 = vset.pattern.permute.xlu0 0
        %1191 = vperm.xlu0 %1190, %v1133
        %v1192 = vpop.permute.xlu0 %1191
        %1195 = vset.pattern.permute.xlu0 0
        %1196 = vperm.xlu0 %1195, %v1134
        %v1197 = vpop.permute.xlu0 %1196
        %1200 = vset.pattern.permute.xlu0 0
        %1201 = vperm.xlu0 %1200, %v1135
        %v1202 = vpop.permute.xlu0 %1201
        %1205 = vset.pattern.permute.xlu0 0
        %1206 = vperm.xlu0 %1205, %v1136
        %v1207 = vpop.permute.xlu0 %1206
        %1210 = vset.pattern.permute.xlu0 0
        %1211 = vperm.xlu0 %1210, %v1137
        %v1212 = vpop.permute.xlu0 %1211
        %1215 = vset.pattern.permute.xlu0 0
        %1216 = vperm.xlu0 %1215, %v1138
        %v1217 = vpop.permute.xlu0 %1216
        %v1219 = vmul.f32 %v1142, %v1107
        %v1220 = vmul.f32 %v1147, %v1108
        %v1221 = vmul.f32 %v1152, %v1109
        %v1222 = vmul.f32 %v1157, %v1110
        %v1223 = vmul.f32 %v1162, %v1111
        %v1224 = vmul.f32 %v1167, %v1112
        %v1225 = vmul.f32 %v1172, %v1113
        %v1226 = vmul.f32 %v1177, %v1114
        %v1227 = vmul.f32 %v1182, %v1115
        %v1228 = vmul.f32 %v1187, %v1116
        %v1229 = vmul.f32 %v1192, %v1117
        %v1230 = vmul.f32 %v1197, %v1118
        %v1231 = vmul.f32 %v1202, %v1119
        %v1232 = vmul.f32 %v1207, %v1120
        %v1233 = vmul.f32 %v1212, %v1121
        %v1234 = vmul.f32 %v1217, %v1122
        %v1235 = vadd.f32 %v1219, %v1220
        %v1236 = vadd.f32 %v1235, %v1221
        %v1237 = vadd.f32 %v1236, %v1222
        %v1238 = vadd.f32 %v1237, %v1223
        %v1239 = vadd.f32 %v1238, %v1224
        %v1240 = vadd.f32 %v1239, %v1225
        %v1241 = vadd.f32 %v1240, %v1226
        %v1242 = vadd.f32 %v1241, %v1227
        %v1243 = vadd.f32 %v1242, %v1228
        %v1244 = vadd.f32 %v1243, %v1229
        %v1245 = vadd.f32 %v1244, %v1230
        %v1246 = vadd.f32 %v1245, %v1231
        %v1247 = vadd.f32 %v1246, %v1232
        %v1248 = vadd.f32 %v1247, %v1233
        %v1249 = vadd.f32 %v1248, %v1234
        %v1250 = vrot.slane %v1249, 4
        %v1251 = vadd.f32 %v1249, %v1250
        %v1252 = vrot.slane %v1251, 2
        %v1253 = vadd.f32 %v1251, %v1252
        %v1254 = vrot.slane %v1253, 1
        %v1255 = vadd.f32 %v1253, %v1254
        %v1256 = vld [vmem:[#allocation2] sm:$0x1]
        %1258 = vset.pattern.permute.xlu0 0
        %1259 = vperm.xlu0 %1258, %v1256
        %v1260 = vpop.permute.xlu0 %1259
        %v1262 = vperm.slane %v1260, 0
        %v1263 = vadd.f32 %v1255, %v1262
        %1264 = vst [vmem:[%s305] sm:$0x1] %v1263
        %s1265 = sand.u32 %s204, 1
        %s1266 = scalar_lea.sflag [#allocation4], %s1265
        %s1267 = sand.u32 %s204, 1
        %s1268 = scalar_lea.vmem [#allocation3], %s1267
        // Predicated region
        $region49: #{tpu_custom_call.1} parent=47 // pred_check
          %p1269 = pneg %p214
        $region50: #{tpu_custom_call.1} parent=47 // pred_check_branch
          %1271 = sbr.rel (%p1269) target = $region52
        $region51: #{tpu_custom_call.1} parent=47 // pred_region
          %1273 = vsyncadd %s1266, 0
          %s1274 = sadd.s32 %s28, %s27
          %s1275 = scalar_lea.hbm %s7, %s1274
          %s1277 = sshll.u32 %s1268, 4
          %s1278 = int_to_ptr.vmem [resolvable:$true] %s1277
          %s1279 = sshll.u32 %s1275, 4
          %s1280 = int_to_ptr.hbm [resolvable:$true] %s1279
          %1282 = dma.vmem_to_hbm [thread:$0]  %s1278, 16, %s1280, %s1266
        $region52: #{tpu_custom_call.1} parent=47 // pred_fallthru
          _
      $region48: #{tpu_custom_call.1} parent=5 // pred_fallthru
        _
      %p1283 = scmp.le.s32.totalorder 2, %s18
      // Predicated region
      $region53: #{tpu_custom_call.1} parent=5 // pred_check
        %p1284 = pneg %p1283
      $region54: #{tpu_custom_call.1} parent=5 // pred_check_branch
        %1286 = sbr.rel (%p1284) target = $region56
      $region55: #{tpu_custom_call.1} parent=5 // pred_region
        %s1287 = ssub.s32 %s18, 2
        // Predicated region
        $region57: #{tpu_custom_call.1} parent=55 // pred_check
          %p1288 = pneg %p220
        $region58: #{tpu_custom_call.1} parent=55 // pred_check_branch
          %1290 = sbr.rel (%p1288) target = $region60
        $region59: #{tpu_custom_call.1} parent=55 // pred_region
          %s1291 = sand.u32 %s205, 1
          %s1292 = scalar_lea.sflag [#allocation4], %s1291
          %s1293 = sand.u32 %s205, 1
          %s1294 = scalar_lea.vmem [#allocation3], %s1293
          %1296 = dma.done %s1292, 16
        $region60: #{tpu_custom_call.1} parent=55 // pred_fallthru
          _
      $region56: #{tpu_custom_call.1} parent=5 // pred_fallthru
        _
    $region6: #{tpu_custom_call.1} parent=1 // loop_footer
      %s22 = sadd.s32 1, %s18
    $region7: #{tpu_custom_call.1} parent=1 // loop_footer_branch
      %17 = sbr.rel target = $region3
    $region8: #{tpu_custom_call.1} parent=1 // loop_exit
      _
    %1297 = vsyncpa [#allocation4], 1
    %s1298 = scalar_lea.sflag [#allocation4], 1
    %1299 = vsyncpa %s1298, 1

</llo_original>
